<compile_context>
chip_gen: v7x
topology: tpu7x:2x2x1
jax: 0.10.0
libtpu: 0.0.40
codegen_flags: <defaults>
</compile_context>

<pallas_src>
import functools

import jax
import jax.numpy as jnp
from jax.experimental import pallas as pl
from jax.experimental.pallas import tpu as pltpu


def _round_up(v: int, m: int) -> int:
    return ((v + m - 1) // m) * m


def mlp_kernel(x_ref, w1_ref, w2_ref, o_ref):
    # x_ref : (TM, Dp)   current row tile (compute dtype, e.g. bf16)
    # w1_ref: (Dp, Hp)   pre-transposed + padded layer-1 weight (resident)
    # w2_ref: (Hp, Op)   pre-transposed + padded layer-2 weight (resident)
    # o_ref : (TM, Op)

    # h = x @ W1  -> MXU, f32 accumulation.
    h = jnp.dot(x_ref[...], w1_ref[...], preferred_element_type=jnp.float32)
    h = jnp.maximum(h, 0.0)  # ReLU on the f32 accumulator (VPU)

    # out = relu(h) @ W2  -> hidden stays in vregs and feeds the MXU directly.
    # TODO(synk): for very large H (>= ~4k) add an H-tiled inner loop with a
    # (TM, Op) f32 accumulator instead of materializing the full (TM, Hp) hidden.
    out = jnp.dot(h.astype(w2_ref.dtype), w2_ref[...],
                  preferred_element_type=jnp.float32)
    o_ref[...] = out.astype(o_ref.dtype)


def _vmem_need_bytes(tm, dp, hp, op, in_itemsize, out_itemsize):
    # Resident weights are double-buffered by Pallas' default pipelining.
    # TODO(synk): pl.Buffered(1) on the weight BlockSpecs would halve this once
    # verified on the target jax version (their index_map is constant).
    weights = 2 * (dp * hp + hp * op) * in_itemsize
    io = 2 * tm * dp * in_itemsize + 2 * tm * op * out_itemsize
    hidden = tm * hp * 4  # f32 hidden may spill from vregs to VMEM
    return weights + io + hidden


@functools.partial(jax.jit,
                   static_argnames=("tm", "pad_to", "compute_dtype", "out_dtype"))
def mlp_forward(x, w1, w2, *, tm=512, pad_to=128,
                compute_dtype=jnp.bfloat16, out_dtype=None):
    """Fused MLP forward: relu(x @ w1.T) @ w2.T.

    x : (N, D_in)
    w1: (H, D_in)     -- PyTorch nn.Linear weight layout, bias=False
    w2: (D_out, H)    -- PyTorch nn.Linear weight layout, bias=False
    """
    N, D_in = x.shape
    H, _ = w1.shape
    D_out, _ = w2.shape
    out_dtype = out_dtype or x.dtype

    # --- Lane-align feature dims (exact: zero padding) ---------------------
    Dp = _round_up(D_in, pad_to)
    Hp = _round_up(H, pad_to)
    Op = _round_up(D_out, pad_to)

    cd = jnp.dtype(compute_dtype)
    xp = jnp.pad(x.astype(cd), ((0, 0), (0, Dp - D_in)))
    # Pre-transpose ONCE to (in, out) layout so the kernel does plain x @ W.
    w1t = jnp.pad(jnp.transpose(w1).astype(cd), ((0, Dp - D_in), (0, Hp - H)))
    w2t = jnp.pad(jnp.transpose(w2).astype(cd), ((0, Hp - H), (0, Op - D_out)))

    in_itemsize = cd.itemsize
    out_itemsize = jnp.dtype(out_dtype).itemsize

    # --- Row tile selection under a v7x-safe VMEM budget --------------------
    tm = min(tm, N)
    if tm < N:
        tm = max(8, (tm // 8) * 8)
    budget = 48 << 20  # conservative vs. v7x 64 MiB physical VMEM per TC
    while tm > 8 and _vmem_need_bytes(tm, Dp, Hp, Op, in_itemsize,
                                      out_itemsize) > budget:
        tm = max(8, ((tm // 2) // 8) * 8)
    # TODO(synk): if the padded weights alone exceed the VMEM budget, switch to
    # an H/D_out-tiled streaming variant (second grid axis marked "arbitrary");
    # optionally fp8 weights on v7x.

    need = _vmem_need_bytes(tm, Dp, Hp, Op, in_itemsize, out_itemsize)
    vmem_limit = int(min(max(need + (8 << 20), 32 << 20), 64 << 20))

    grid = (pl.cdiv(N, tm),)
    flops = 2 * N * (Dp * Hp + Hp * Op)
    bytes_accessed = ((N * Dp + Dp * Hp + Hp * Op) * in_itemsize
                      + N * Op * out_itemsize)

    out_padded = pl.pallas_call(
        mlp_kernel,
        out_shape=jax.ShapeDtypeStruct((N, Op), out_dtype),
        grid=grid,
        in_specs=[
            # x: blocked along rows -> pipelined HBM->VMEM DMA per grid step
            pl.BlockSpec((tm, Dp), lambda i: (i, 0)),
            # weights: constant index_map -> stay resident in VMEM (no re-DMA)
            pl.BlockSpec((Dp, Hp), lambda i: (0, 0)),
            pl.BlockSpec((Hp, Op), lambda i: (0, 0)),
        ],
        out_specs=pl.BlockSpec((tm, Op), lambda i: (i, 0)),
        compiler_params=pltpu.CompilerParams(
            # row tiles are independent -> shard across TCs (v7x megacore)
            dimension_semantics=("parallel",),
            vmem_limit_bytes=vmem_limit,
        ),
        cost_estimate=pl.CostEstimate(
            flops=flops, transcendentals=0, bytes_accessed=bytes_accessed),
    )(xp, w1t, w2t)

    # Slice away the padded output columns (cheap XLA slice).
    return out_padded[:, :D_out]


if __name__ == "__main__":
    # Small shapes consistent with the module; tm=128 gives a 2-step grid so the
    # row pipeline (and v7x 2-TC sharding) is actually exercised.
    N, D_in, H, D_out = 256, 32, 64, 16

    key = jax.random.PRNGKey(0)
    kx, k1, k2 = jax.random.split(key, 3)
    x = jax.random.normal(kx, (N, D_in), dtype=jnp.float32)
    # Deterministic synthetic weights in PyTorch nn.Linear layout (out, in).
    w1 = jax.random.normal(k1, (H, D_in), dtype=jnp.float32) * 0.1
    w2 = jax.random.normal(k2, (D_out, H), dtype=jnp.float32) * 0.1

    # Pure-f32 reference: same math as the PyTorch forward.
    ref = jnp.maximum(x @ w1.T, 0.0) @ w2.T

    # bf16 datapath (default) -- expect ~1e-2-level divergence from f32 ref.
    out_bf16 = jax.block_until_ready(mlp_forward(x, w1, w2, tm=128))
    assert out_bf16.shape == (N, D_out)
    assert jnp.allclose(out_bf16, ref, atol=3e-2, rtol=3e-2)

    # f32 datapath for an exactness check of the kernel structure.
    out_f32 = jax.block_until_ready(
        mlp_forward(x, w1, w2, tm=128, compute_dtype=jnp.float32))
    assert out_f32.shape == (N, D_out)
    assert jnp.allclose(out_f32, ref, atol=1e-5, rtol=1e-5)

    print("KERNEL_OK")
</pallas_src>

<mosaic_0001>
module attributes {stable_mosaic.version = 11 : i64} {
  func.func @mlp_kernel(%arg0: i32, %arg1: memref<128x128xbf16, #tpu.memory_space<vmem>>, %arg2: memref<128x128xbf16, #tpu.memory_space<vmem>>, %arg3: memref<128x128xbf16, #tpu.memory_space<vmem>>, %arg4: memref<128x128xf32, #tpu.memory_space<vmem>>) attributes {dimension_semantics = [#tpu.dimension_semantics<parallel>], iteration_bounds = array<i64: 2>, scalar_prefetch = 0 : i64, scratch_operands = 0 : i64, tpu.core_type = #tpu.core_type<tc>, window_params = [{transform_indices = @transform_0, window_bounds = array<i64: 128, 128>}, {pipeline_mode = #tpu.pipeline_mode<synchronous>, transform_indices = @transform_1, window_bounds = array<i64: 128, 128>}, {pipeline_mode = #tpu.pipeline_mode<synchronous>, transform_indices = @transform_2, window_bounds = array<i64: 128, 128>}, {transform_indices = @transform_3, window_bounds = array<i64: 128, 128>}]} {
    %c0 = arith.constant 0 : index
    %c0_0 = arith.constant 0 : index
    %0 = vector.load %arg1[%c0, %c0_0] : memref<128x128xbf16, #tpu.memory_space<vmem>>, vector<128x128xbf16>
    %c0_1 = arith.constant 0 : index
    %c0_2 = arith.constant 0 : index
    %1 = vector.load %arg2[%c0_1, %c0_2] : memref<128x128xbf16, #tpu.memory_space<vmem>>, vector<128x128xbf16>
    %cst = arith.constant dense<0.000000e+00> : vector<128x128xf32>
    %2 = tpu.matmul %0, %1, %cst {dimension_numbers = #tpu.dot_dimension_numbers<[1], [0], [0], [1], [0, 0, 1, 1], [], []>} : vector<128x128xbf16>, vector<128x128xbf16>, vector<128x128xf32> -> vector<128x128xf32>
    %cst_3 = arith.constant 0.000000e+00 : f32
    %3 = vector.broadcast %cst_3 : f32 to vector<128x128xf32>
    %4 = arith.maximumf %2, %3 : vector<128x128xf32>
    %5 = arith.truncf %4 : vector<128x128xf32> to vector<128x128xbf16>
    %c0_4 = arith.constant 0 : index
    %c0_5 = arith.constant 0 : index
    %6 = vector.load %arg3[%c0_4, %c0_5] : memref<128x128xbf16, #tpu.memory_space<vmem>>, vector<128x128xbf16>
    %cst_6 = arith.constant dense<0.000000e+00> : vector<128x128xf32>
    %7 = tpu.matmul %5, %6, %cst_6 {dimension_numbers = #tpu.dot_dimension_numbers<[1], [0], [0], [1], [0, 0, 1, 1], [], []>} : vector<128x128xbf16>, vector<128x128xbf16>, vector<128x128xf32> -> vector<128x128xf32>
    %c0_7 = arith.constant 0 : index
    %c0_8 = arith.constant 0 : index
    %8 = vector.load %arg4[%c0_7, %c0_8] : memref<128x128xf32, #tpu.memory_space<vmem>>, vector<128x128xf32>
    tpu.vector_store %arg4[%c0_7, %c0_8], %7 {strides = array<i32>} : memref<128x128xf32, #tpu.memory_space<vmem>>, vector<128x128xf32>,
    return
  }
  func.func @transform_0(%arg0: i32) -> (i32, i32) {
    %c0_i32 = arith.constant 0 : i32
    %c0_i32_0 = arith.constant 0 : i32
    return %arg0, %c0_i32 : i32, i32
  }
  func.func @transform_1(%arg0: i32) -> (i32, i32) {
    %c0_i32 = arith.constant 0 : i32
    %c0_i32_0 = arith.constant 0 : i32
    %c0_i32_1 = arith.constant 0 : i32
    return %c0_i32, %c0_i32_0 : i32, i32
  }
  func.func @transform_2(%arg0: i32) -> (i32, i32) {
    %c0_i32 = arith.constant 0 : i32
    %c0_i32_0 = arith.constant 0 : i32
    %c0_i32_1 = arith.constant 0 : i32
    return %c0_i32, %c0_i32_0 : i32, i32
  }
  func.func @transform_3(%arg0: i32) -> (i32, i32) {
    %c0_i32 = arith.constant 0 : i32
    %c0_i32_0 = arith.constant 0 : i32
    return %arg0, %c0_i32 : i32, i32
  }
}

</mosaic_0001>

<llo_original>
// kernel: mlp_forward.1
$region0: #{mlp_forward.1}
  #allocation0 [shape = 'u32[]', space=smem, size = 0x4, offset = 0x4, fixed_abs, tag = 'smem constant byte address 0x4 - core index']
  #allocation1 [shape = 'u32[144,128]{1,0:T(1,128)}', space=vmem, size = 0x12000, scoped, tag = 'internal scratch']
  %s0 = inlined_call_operand.vmem [shape: bf16[256,128], index: 0, kind: input, shape index: {}]
  %s1 = inlined_call_operand.vmem [shape: bf16[128,128], index: 1, kind: input, shape index: {}]
  %s2 = inlined_call_operand.vmem [shape: bf16[128,128], index: 2, kind: input, shape index: {}]
  %s3 = inlined_call_operand.vmem [shape: f32[256,128], index: 3, kind: output, shape index: {}]
  %s4 = sld [smem:[#allocation0]]
  $region45: #{mlp_forward.1} parent=0
    _
  %s6 = ssub.s32 1, %s4
  %s7 = scalar_select 0, %s6, %s4
  loop: start=0, step=1, limit=4
  $region2: #{mlp_forward.1} parent=0 // loop_pre_header
    _
  $region3: #{mlp_forward.1} parent=0 // loop_header
    %s9 = sphi 0, %s13
    %p10 = scmp.ge.s32.totalorder %s9, 4
    %s19 = sphi 0, %s21
    %s22 = sphi 0, %s19
    %s23 = sphi 0, %s22
    %s39 = sphi 0, %s23
    %s43 = sphi 0, %s43
    %s45 = sphi 0, %s43
    %s46 = sphi 0, %s45
    %s60 = sphi 0, %s46
    %s64 = sphi 0, %s64
    %s66 = sphi 0, %s64
    %s67 = sphi 0, %s66
    %s81 = sphi 0, %s67
    %s87 = sphi 0, %s89
    %s90 = sphi 0, %s87
    %s91 = sphi 0, %s90
    %s107 = sphi 0, %s91
  $region4: #{mlp_forward.1} parent=0 // loop_header_branch
    %12 = sbr.rel (%p10) target = $region8
  $region5: #{mlp_forward.1} parent=0 // loop_body
    %s14 = ssub.s32 %s9, 1
    %s15 = ssub.s32 %s9, 2
    %s16 = sadd.s32 %s9, 1
    %s17 = ssub.s32 %s9, %s16
    %p18 = scmp.eq.s32.totalorder %s17, 0
    %s20 = sadd.s32 %s19, 1
    %s21 = scalar_select %p18, %s19, %s20
    %p24 = pneg %p18
    %p25 = scmp.eq.s32.totalorder %s9, 1
    %p26 = por %p24, %p25
    %p27 = scmp.ne.s32.totalorder %s19, %s22
    %p28 = scmp.eq.s32.totalorder %s9, 0
    %p29 = por %p27, %p28
    %p30 = scmp.ne.s32.totalorder %s19, %s22
    %p31 = scmp.eq.s32.totalorder %s14, 1
    %p32 = por %p30, %p31
    %p33 = scmp.ne.s32.totalorder %s22, %s23
    %p34 = scmp.eq.s32.totalorder %s14, 0
    %p35 = por %p33, %p34
    %p36 = scmp.ne.s32.totalorder %s22, %s23
    %p37 = scmp.eq.s32.totalorder %s15, 1
    %p38 = por %p36, %p37
    %p40 = scmp.ne.s32.totalorder %s23, %s39
    %p41 = scmp.eq.s32.totalorder %s15, 0
    %p42 = por %p40, %p41
    %s44 = sadd.s32 %s43, 1
    %p47 = scmp.eq.s32.totalorder %s9, 1
    %p48 = scmp.ne.s32.totalorder %s43, %s45
    %p49 = scmp.eq.s32.totalorder %s9, 0
    %p50 = por %p48, %p49
    %p51 = scmp.ne.s32.totalorder %s43, %s45
    %p52 = scmp.eq.s32.totalorder %s14, 1
    %p53 = por %p51, %p52
    %p54 = scmp.ne.s32.totalorder %s45, %s46
    %p55 = scmp.eq.s32.totalorder %s14, 0
    %p56 = por %p54, %p55
    %p57 = scmp.ne.s32.totalorder %s45, %s46
    %p58 = scmp.eq.s32.totalorder %s15, 1
    %p59 = por %p57, %p58
    %p61 = scmp.ne.s32.totalorder %s46, %s60
    %p62 = scmp.eq.s32.totalorder %s15, 0
    %p63 = por %p61, %p62
    %s65 = sadd.s32 %s64, 1
    %p68 = scmp.eq.s32.totalorder %s9, 1
    %p69 = scmp.ne.s32.totalorder %s64, %s66
    %p70 = scmp.eq.s32.totalorder %s9, 0
    %p71 = por %p69, %p70
    %p72 = scmp.ne.s32.totalorder %s64, %s66
    %p73 = scmp.eq.s32.totalorder %s14, 1
    %p74 = por %p72, %p73
    %p75 = scmp.ne.s32.totalorder %s66, %s67
    %p76 = scmp.eq.s32.totalorder %s14, 0
    %p77 = por %p75, %p76
    %p78 = scmp.ne.s32.totalorder %s66, %s67
    %p79 = scmp.eq.s32.totalorder %s15, 1
    %p80 = por %p78, %p79
    %p82 = scmp.ne.s32.totalorder %s67, %s81
    %p83 = scmp.eq.s32.totalorder %s15, 0
    %p84 = por %p82, %p83
    %s85 = ssub.s32 %s9, %s16
    %p86 = scmp.eq.s32.totalorder %s85, 0
    %s88 = sadd.s32 %s87, 1
    %s89 = scalar_select %p86, %s87, %s88
    %p92 = pneg %p86
    %p93 = scmp.eq.s32.totalorder %s9, 1
    %p94 = por %p92, %p93
    %p95 = scmp.ne.s32.totalorder %s87, %s90
    %p96 = scmp.eq.s32.totalorder %s9, 0
    %p97 = por %p95, %p96
    %p98 = scmp.ne.s32.totalorder %s87, %s90
    %p99 = scmp.eq.s32.totalorder %s14, 1
    %p100 = por %p98, %p99
    %p101 = scmp.ne.s32.totalorder %s90, %s91
    %p102 = scmp.eq.s32.totalorder %s14, 0
    %p103 = por %p101, %p102
    %p104 = scmp.ne.s32.totalorder %s90, %s91
    %p105 = scmp.eq.s32.totalorder %s15, 1
    %p106 = por %p104, %p105
    %p108 = scmp.ne.s32.totalorder %s91, %s107
    %p109 = scmp.eq.s32.totalorder %s15, 0
    %p110 = por %p108, %p109
    %p111 = scmp.le.s32.totalorder 1, %s9
    %p112 = scmp.lt.s32.totalorder %s9, 3
    %p113 = pnand %p111, %p112
    %p114 = pneg %p113
    // Predicated region
    $region9: #{mlp_forward.1} parent=5 // pred_check
      _
    $region10: #{mlp_forward.1} parent=5 // pred_check_branch
      %116 = sbr.rel (%p113) target = $region12
    $region11: #{mlp_forward.1} parent=5 // pred_region
      %s117 = ssub.s32 %s9, 1
      // Predicated region
      $region13: #{mlp_forward.1} parent=11 // pred_check
        %p118 = pneg %p56
      $region14: #{mlp_forward.1} parent=11 // pred_check_branch
        %120 = sbr.rel (%p118) target = $region16
      $region15: #{mlp_forward.1} parent=11 // pred_region
        _
      $region16: #{mlp_forward.1} parent=11 // pred_fallthru
        _
      // Predicated region
      $region17: #{mlp_forward.1} parent=11 // pred_check
        %p121 = pneg %p77
      $region18: #{mlp_forward.1} parent=11 // pred_check_branch
        %123 = sbr.rel (%p121) target = $region20
      $region19: #{mlp_forward.1} parent=11 // pred_region
        _
      $region20: #{mlp_forward.1} parent=11 // pred_fallthru
        _
    $region12: #{mlp_forward.1} parent=5 // pred_fallthru
      _
    %p124 = scmp.lt.s32.totalorder %s9, 2
    // Predicated region
    $region21: #{mlp_forward.1} parent=5 // pred_check
      %p125 = pneg %p124
    $region22: #{mlp_forward.1} parent=5 // pred_check_branch
      %127 = sbr.rel (%p125) target = $region24
    $region23: #{mlp_forward.1} parent=5 // pred_region
      // Predicated region
      $region25: #{mlp_forward.1} parent=23 // pred_check
        %p128 = pneg %p29
      $region26: #{mlp_forward.1} parent=23 // pred_check_branch
        %130 = sbr.rel (%p128) target = $region28
      $region27: #{mlp_forward.1} parent=23 // pred_region
        %s131 = smul.u32 16, %s9
        %p132 = scmp.lt.s32.totalorder %s131, 31
        %s133 = scalar_select %p132, %s131, 31
        %s134 = smul.addr %s133, 4
        %s135 = scalar_lea.vmem %s0, %s134
        %s136 = smul.u32 16, %s9
      $region28: #{mlp_forward.1} parent=23 // pred_fallthru
        _
    $region24: #{mlp_forward.1} parent=5 // pred_fallthru
      _
    %p137 = scmp.le.s32.totalorder 1, %s9
    %p138 = scmp.lt.s32.totalorder %s9, 3
    %p139 = pnand %p137, %p138
    %p140 = pneg %p139
    // Predicated region
    $region29: #{mlp_forward.1} parent=5 // pred_check
      _
    $region30: #{mlp_forward.1} parent=5 // pred_check_branch
      %142 = sbr.rel (%p139) target = $region32
    $region31: #{mlp_forward.1} parent=5 // pred_region
      %s143 = ssub.s32 %s9, 1
      %s144 = smul.u32 16, %s14
      %p145 = scmp.lt.s32.totalorder %s144, 31
      %s146 = scalar_select %p145, %s144, 31
      %s147 = smul.addr %s146, 4
      %s148 = scalar_lea.vmem %s0, %s147
      %p149 = pneg %p35
      %p150 = pneg %p32
      %p151 = pneg %p56
      %p152 = pneg %p53
      %p153 = pneg %p77
      %p154 = pneg %p74
      %p155 = pneg %p103
      %p156 = pneg %p100
      %s157 = smul.u32 16, %s14
      %p158 = scmp.lt.s32.totalorder %s157, 31
      %s159 = scalar_select %p158, %s157, 31
      %s160 = smul.addr %s159, 8
      %s161 = scalar_lea.vmem %s3, %s160
      %s162 = smul.u32 16, %s14
      %p163 = scmp.lt.s32.totalorder %s162, 31
      %s164 = scalar_select %p163, %s162, 31
      %s165 = smul.addr %s164, 4
      %s166 = scalar_lea.vmem %s0, %s165
      %s167 = smul.u32 16, %s14
      %s168 = smul.u32 16, %s14
      %p169 = scmp.lt.s32.totalorder %s168, 31
      %s170 = scalar_select %p169, %s168, 31
      %s171 = smul.addr %s170, 8
      %s172 = scalar_lea.vmem %s3, %s171
      %s173 = smul.u32 16, %s14
      %v175 = vld [vmem:[%s166] sm:$0xf]
      %v176 = vld [vmem:[%s166 + $0x4] sm:$0xf]
      %v177 = vld [vmem:[%s166 + $0x8] sm:$0xf]
      %v178 = vld [vmem:[%s166 + $0xc] sm:$0xf]
      %v179 = vld [vmem:[%s166 + $0x10] sm:$0xf]
      %v180 = vld [vmem:[%s166 + $0x14] sm:$0xf]
      %v181 = vld [vmem:[%s166 + $0x18] sm:$0xf]
      %v182 = vld [vmem:[%s166 + $0x1c] sm:$0xf]
      %v183 = vld [vmem:[%s166 + $0x20] sm:$0xf]
      %v184 = vld [vmem:[%s166 + $0x24] sm:$0xf]
      %v185 = vld [vmem:[%s166 + $0x28] sm:$0xf]
      %v186 = vld [vmem:[%s166 + $0x2c] sm:$0xf]
      %v187 = vld [vmem:[%s166 + $0x30] sm:$0xf]
      %v188 = vld [vmem:[%s166 + $0x34] sm:$0xf]
      %v189 = vld [vmem:[%s166 + $0x38] sm:$0xf]
      %v190 = vld [vmem:[%s166 + $0x3c] sm:$0xf]
      %v191 = vld [vmem:[%s1] sm:$0xf]
      %v192 = vld [vmem:[%s1 + $0x4] sm:$0xf]
      %v193 = vld [vmem:[%s1 + $0x8] sm:$0xf]
      %v194 = vld [vmem:[%s1 + $0xc] sm:$0xf]
      %v195 = vld [vmem:[%s1 + $0x10] sm:$0xf]
      %v196 = vld [vmem:[%s1 + $0x14] sm:$0xf]
      %v197 = vld [vmem:[%s1 + $0x18] sm:$0xf]
      %v198 = vld [vmem:[%s1 + $0x1c] sm:$0xf]
      %v199 = vld [vmem:[%s1 + $0x20] sm:$0xf]
      %v200 = vld [vmem:[%s1 + $0x24] sm:$0xf]
      %v201 = vld [vmem:[%s1 + $0x28] sm:$0xf]
      %v202 = vld [vmem:[%s1 + $0x2c] sm:$0xf]
      %v203 = vld [vmem:[%s1 + $0x30] sm:$0xf]
      %v204 = vld [vmem:[%s1 + $0x34] sm:$0xf]
      %v205 = vld [vmem:[%s1 + $0x38] sm:$0xf]
      %v206 = vld [vmem:[%s1 + $0x3c] sm:$0xf]
      %v223 = vunpack.c.l.b16 %v175
      %v224 = vunpack.c.l.b16 %v176
      %v225 = vunpack.c.l.b16 %v177
      %v226 = vunpack.c.l.b16 %v178
      %v227 = vunpack.c.l.b16 %v179
      %v228 = vunpack.c.l.b16 %v180
      %v229 = vunpack.c.l.b16 %v181
      %v230 = vunpack.c.l.b16 %v182
      %v231 = vunpack.c.l.b16 %v183
      %v232 = vunpack.c.l.b16 %v184
      %v233 = vunpack.c.l.b16 %v185
      %v234 = vunpack.c.l.b16 %v186
      %v235 = vunpack.c.l.b16 %v187
      %v236 = vunpack.c.l.b16 %v188
      %v237 = vunpack.c.l.b16 %v189
      %v238 = vunpack.c.l.b16 %v190
      %v239 = vpack.c.b16 %v224, %v223
      %v240 = vpack.c.b16 %v226, %v225
      %v241 = vpack.c.b16 %v228, %v227
      %v242 = vpack.c.b16 %v230, %v229
      %v243 = vpack.c.b16 %v232, %v231
      %v244 = vpack.c.b16 %v234, %v233
      %v245 = vpack.c.b16 %v236, %v235
      %v246 = vpack.c.b16 %v238, %v237
      %v271 = vunpack.c.l.b16 %v191
      %v272 = vunpack.c.l.b16 %v192
      %v273 = vunpack.c.l.b16 %v193
      %v274 = vunpack.c.l.b16 %v194
      %v275 = vunpack.c.l.b16 %v195
      %v276 = vunpack.c.l.b16 %v196
      %v277 = vunpack.c.l.b16 %v197
      %v278 = vunpack.c.l.b16 %v198
      %v279 = vunpack.c.l.b16 %v199
      %v280 = vunpack.c.l.b16 %v200
      %v281 = vunpack.c.l.b16 %v201
      %v282 = vunpack.c.l.b16 %v202
      %v283 = vunpack.c.l.b16 %v203
      %v284 = vunpack.c.l.b16 %v204
      %v285 = vunpack.c.l.b16 %v205
      %v286 = vunpack.c.l.b16 %v206
      %v287 = vpack.c.b16 %v272, %v271
      %v288 = vpack.c.b16 %v274, %v273
      %v289 = vpack.c.b16 %v276, %v275
      %v290 = vpack.c.b16 %v278, %v277
      %v291 = vpack.c.b16 %v280, %v279
      %v292 = vpack.c.b16 %v282, %v281
      %v293 = vpack.c.b16 %v284, %v283
      %v294 = vpack.c.b16 %v286, %v285
      %303 = vmatprep.subr.bf16.mxu0 0
      %304 = vmatpush1.bf16.msra.mxu0 %v287
      %305 = vmatprep.subr.bf16.mxu0 0
      %306 = vmatpush1.bf16.msra.mxu0 %v288
      %307 = vmatprep.subr.bf16.mxu0 0
      %308 = vmatpush1.bf16.msra.mxu0 %v289
      %309 = vmatprep.subr.bf16.mxu0 0
      %310 = vmatpush1.bf16.msra.mxu0 %v290
      %311 = vmatprep.subr.bf16.mxu0 0
      %312 = vmatpush1.bf16.msra.mxu0 %v291
      %313 = vmatprep.subr.bf16.mxu0 0
      %314 = vmatpush1.bf16.msra.mxu0 %v292
      %315 = vmatprep.subr.bf16.mxu0 0
      %316 = vmatpush1.bf16.msra.mxu0 %v293
      %317 = vmatprep.subr.bf16.mxu0 0
      %318 = vmatpush1.bf16.msra.mxu0 %v294
      %319 = vmatprep.subr.bf16.mxu0 0
      %320 = vmatpush1.bf16.msra.mxu0 0
      %321 = vmatprep.subr.bf16.mxu0 0
      %322 = vmatpush1.bf16.msra.mxu0 0
      %323 = vmatprep.subr.bf16.mxu0 0
      %324 = vmatpush1.bf16.msra.mxu0 0
      %325 = vmatprep.subr.bf16.mxu0 0
      %326 = vmatpush1.bf16.msra.mxu0 0
      %327 = vmatprep.subr.bf16.mxu0 0
      %328 = vmatpush1.bf16.msra.mxu0 0
      %329 = vmatprep.subr.bf16.mxu0 0
      %330 = vmatpush1.bf16.msra.mxu0 0
      %331 = vmatprep.subr.bf16.mxu0 0
      %332 = vmatpush1.bf16.msra.mxu0 0
      %333 = vmatprep.subr.bf16.mxu0 0
      %334 = vmatpush1.bf16.msra.mxu0 0
      %335 = vmatprep.mubr.bf16.mxu0 0
      %336 = vmatmul.mubr.bf16.gmra.mrb[0].mxu0 %v239
      %v337 = vpop.f32.mrb[0].mxu0
      %v338 = vadd.f32 0.0, %v337
      %v339 = vpop.f32.mrb[0].mxu0
      %v340 = vpop.f32.mrb[0].mxu0
      %v341 = vadd.f32 0.0, %v340
      %v342 = vpop.f32.mrb[0].mxu0
      %343 = vmatprep.mubr.bf16.mxu0 0
      %344 = vmatmul.mubr.bf16.gmra.mrb[0].mxu0 %v240
      %v345 = vpop.f32.mrb[0].mxu0
      %v346 = vadd.f32 0.0, %v345
      %v347 = vpop.f32.mrb[0].mxu0
      %v348 = vpop.f32.mrb[0].mxu0
      %v349 = vadd.f32 0.0, %v348
      %v350 = vpop.f32.mrb[0].mxu0
      %351 = vmatprep.mubr.bf16.mxu0 0
      %352 = vmatmul.mubr.bf16.gmra.mrb[0].mxu0 %v241
      %v353 = vpop.f32.mrb[0].mxu0
      %v354 = vadd.f32 0.0, %v353
      %v355 = vpop.f32.mrb[0].mxu0
      %v356 = vpop.f32.mrb[0].mxu0
      %v357 = vadd.f32 0.0, %v356
      %v358 = vpop.f32.mrb[0].mxu0
      %359 = vmatprep.mubr.bf16.mxu0 0
      %360 = vmatmul.mubr.bf16.gmra.mrb[0].mxu0 %v242
      %v361 = vpop.f32.mrb[0].mxu0
      %v362 = vadd.f32 0.0, %v361
      %v363 = vpop.f32.mrb[0].mxu0
      %v364 = vpop.f32.mrb[0].mxu0
      %v365 = vadd.f32 0.0, %v364
      %v366 = vpop.f32.mrb[0].mxu0
      %367 = vmatprep.mubr.bf16.mxu0 0
      %368 = vmatmul.mubr.bf16.gmra.mrb[0].mxu0 %v243
      %v369 = vpop.f32.mrb[0].mxu0
      %v370 = vadd.f32 0.0, %v369
      %v371 = vpop.f32.mrb[0].mxu0
      %v372 = vpop.f32.mrb[0].mxu0
      %v373 = vadd.f32 0.0, %v372
      %v374 = vpop.f32.mrb[0].mxu0
      %375 = vmatprep.mubr.bf16.mxu0 0
      %376 = vmatmul.mubr.bf16.gmra.mrb[0].mxu0 %v244
      %v377 = vpop.f32.mrb[0].mxu0
      %v378 = vadd.f32 0.0, %v377
      %v379 = vpop.f32.mrb[0].mxu0
      %v380 = vpop.f32.mrb[0].mxu0
      %v381 = vadd.f32 0.0, %v380
      %v382 = vpop.f32.mrb[0].mxu0
      %383 = vmatprep.mubr.bf16.mxu0 0
      %384 = vmatmul.mubr.bf16.gmra.mrb[0].mxu0 %v245
      %v385 = vpop.f32.mrb[0].mxu0
      %v386 = vadd.f32 0.0, %v385
      %v387 = vpop.f32.mrb[0].mxu0
      %v388 = vpop.f32.mrb[0].mxu0
      %v389 = vadd.f32 0.0, %v388
      %v390 = vpop.f32.mrb[0].mxu0
      %391 = vmatprep.mubr.bf16.mxu0 0
      %392 = vmatmul.mubr.bf16.gmra.mrb[0].mxu0 %v246
      %v393 = vpop.f32.mrb[0].mxu0
      %v394 = vadd.f32 0.0, %v393
      %v395 = vpop.f32.mrb[0].mxu0
      %v396 = vpop.f32.mrb[0].mxu0
      %v397 = vadd.f32 0.0, %v396
      %v398 = vpop.f32.mrb[0].mxu0
      %399 = vdwg.mxu0
      %v400 = vmax.f32 %v338, 0.0
      %v401 = vmax.f32 %v341, 0.0
      %v402 = vmax.f32 %v346, 0.0
      %v403 = vmax.f32 %v349, 0.0
      %v404 = vmax.f32 %v354, 0.0
      %v405 = vmax.f32 %v357, 0.0
      %v406 = vmax.f32 %v362, 0.0
      %v407 = vmax.f32 %v365, 0.0
      %v408 = vmax.f32 %v370, 0.0
      %v409 = vmax.f32 %v373, 0.0
      %v410 = vmax.f32 %v378, 0.0
      %v411 = vmax.f32 %v381, 0.0
      %v412 = vmax.f32 %v386, 0.0
      %v413 = vmax.f32 %v389, 0.0
      %v414 = vmax.f32 %v394, 0.0
      %v415 = vmax.f32 %v397, 0.0
      %v416 = vpack.c.bf16 %v401, %v400
      %v417 = vpack.c.bf16 %v403, %v402
      %v418 = vpack.c.bf16 %v405, %v404
      %v419 = vpack.c.bf16 %v407, %v406
      %v420 = vpack.c.bf16 %v409, %v408
      %v421 = vpack.c.bf16 %v411, %v410
      %v422 = vpack.c.bf16 %v413, %v412
      %v423 = vpack.c.bf16 %v415, %v414
      %v424 = vld [vmem:[%s2] sm:$0xf]
      %v425 = vld [vmem:[%s2 + $0x4] sm:$0xf]
      %v426 = vld [vmem:[%s2 + $0x8] sm:$0xf]
      %v427 = vld [vmem:[%s2 + $0xc] sm:$0xf]
      %v428 = vld [vmem:[%s2 + $0x10] sm:$0xf]
      %v429 = vld [vmem:[%s2 + $0x14] sm:$0xf]
      %v430 = vld [vmem:[%s2 + $0x18] sm:$0xf]
      %v431 = vld [vmem:[%s2 + $0x1c] sm:$0xf]
      %v432 = vld [vmem:[%s2 + $0x20] sm:$0xf]
      %v433 = vld [vmem:[%s2 + $0x24] sm:$0xf]
      %v434 = vld [vmem:[%s2 + $0x28] sm:$0xf]
      %v435 = vld [vmem:[%s2 + $0x2c] sm:$0xf]
      %v436 = vld [vmem:[%s2 + $0x30] sm:$0xf]
      %v437 = vld [vmem:[%s2 + $0x34] sm:$0xf]
      %v438 = vld [vmem:[%s2 + $0x38] sm:$0xf]
      %v439 = vld [vmem:[%s2 + $0x3c] sm:$0xf]
      %v456 = vunpack.c.l.b16 %v424
      %v457 = vunpack.c.l.b16 %v425
      %v458 = vunpack.c.l.b16 %v426
      %v459 = vunpack.c.l.b16 %v427
      %v460 = vunpack.c.l.b16 %v428
      %v461 = vunpack.c.l.b16 %v429
      %v462 = vunpack.c.l.b16 %v430
      %v463 = vunpack.c.l.b16 %v431
      %v464 = vunpack.c.l.b16 %v432
      %v465 = vunpack.c.l.b16 %v433
      %v466 = vunpack.c.l.b16 %v434
      %v467 = vunpack.c.l.b16 %v435
      %v468 = vunpack.c.l.b16 %v436
      %v469 = vunpack.c.l.b16 %v437
      %v470 = vunpack.c.l.b16 %v438
      %v471 = vunpack.c.l.b16 %v439
      %v472 = vpack.c.b16 %v457, %v456
      %v473 = vpack.c.b16 %v459, %v458
      %v474 = vpack.c.b16 %v461, %v460
      %v475 = vpack.c.b16 %v463, %v462
      %v476 = vpack.c.b16 %v465, %v464
      %v477 = vpack.c.b16 %v467, %v466
      %v478 = vpack.c.b16 %v469, %v468
      %v479 = vpack.c.b16 %v471, %v470
      %488 = vmatprep.subr.bf16.mxu0 0
      %489 = vmatpush1.bf16.msra.mxu0 %v472
      %490 = vmatprep.subr.bf16.mxu0 0
      %491 = vmatpush1.bf16.msra.mxu0 %v473
      %492 = vmatprep.subr.bf16.mxu0 0
      %493 = vmatpush1.bf16.msra.mxu0 %v474
      %494 = vmatprep.subr.bf16.mxu0 0
      %495 = vmatpush1.bf16.msra.mxu0 %v475
      %496 = vmatprep.subr.bf16.mxu0 0
      %497 = vmatpush1.bf16.msra.mxu0 %v476
      %498 = vmatprep.subr.bf16.mxu0 0
      %499 = vmatpush1.bf16.msra.mxu0 %v477
      %500 = vmatprep.subr.bf16.mxu0 0
      %501 = vmatpush1.bf16.msra.mxu0 %v478
      %502 = vmatprep.subr.bf16.mxu0 0
      %503 = vmatpush1.bf16.msra.mxu0 %v479
      %504 = vmatprep.subr.bf16.mxu0 0
      %505 = vmatpush1.bf16.msra.mxu0 0
      %506 = vmatprep.subr.bf16.mxu0 0
      %507 = vmatpush1.bf16.msra.mxu0 0
      %508 = vmatprep.subr.bf16.mxu0 0
      %509 = vmatpush1.bf16.msra.mxu0 0
      %510 = vmatprep.subr.bf16.mxu0 0
      %511 = vmatpush1.bf16.msra.mxu0 0
      %512 = vmatprep.subr.bf16.mxu0 0
      %513 = vmatpush1.bf16.msra.mxu0 0
      %514 = vmatprep.subr.bf16.mxu0 0
      %515 = vmatpush1.bf16.msra.mxu0 0
      %516 = vmatprep.subr.bf16.mxu0 0
      %517 = vmatpush1.bf16.msra.mxu0 0
      %518 = vmatprep.subr.bf16.mxu0 0
      %519 = vmatpush1.bf16.msra.mxu0 0
      %520 = vmatprep.mubr.bf16.mxu0 0
      %521 = vmatmul.mubr.bf16.gmra.mrb[0].mxu0 %v416
      %v522 = vpop.f32.mrb[0].mxu0
      %v523 = vadd.f32 0.0, %v522
      %v524 = vpop.f32.mrb[0].mxu0
      %v525 = vpop.f32.mrb[0].mxu0
      %v526 = vadd.f32 0.0, %v525
      %v527 = vpop.f32.mrb[0].mxu0
      %528 = vmatprep.mubr.bf16.mxu0 0
      %529 = vmatmul.mubr.bf16.gmra.mrb[0].mxu0 %v417
      %v530 = vpop.f32.mrb[0].mxu0
      %v531 = vadd.f32 0.0, %v530
      %v532 = vpop.f32.mrb[0].mxu0
      %v533 = vpop.f32.mrb[0].mxu0
      %v534 = vadd.f32 0.0, %v533
      %v535 = vpop.f32.mrb[0].mxu0
      %536 = vmatprep.mubr.bf16.mxu0 0
      %537 = vmatmul.mubr.bf16.gmra.mrb[0].mxu0 %v418
      %v538 = vpop.f32.mrb[0].mxu0
      %v539 = vadd.f32 0.0, %v538
      %v540 = vpop.f32.mrb[0].mxu0
      %v541 = vpop.f32.mrb[0].mxu0
      %v542 = vadd.f32 0.0, %v541
      %v543 = vpop.f32.mrb[0].mxu0
      %544 = vmatprep.mubr.bf16.mxu0 0
      %545 = vmatmul.mubr.bf16.gmra.mrb[0].mxu0 %v419
      %v546 = vpop.f32.mrb[0].mxu0
      %v547 = vadd.f32 0.0, %v546
      %v548 = vpop.f32.mrb[0].mxu0
      %v549 = vpop.f32.mrb[0].mxu0
      %v550 = vadd.f32 0.0, %v549
      %v551 = vpop.f32.mrb[0].mxu0
      %552 = vmatprep.mubr.bf16.mxu0 0
      %553 = vmatmul.mubr.bf16.gmra.mrb[0].mxu0 %v420
      %v554 = vpop.f32.mrb[0].mxu0
      %v555 = vadd.f32 0.0, %v554
      %v556 = vpop.f32.mrb[0].mxu0
      %v557 = vpop.f32.mrb[0].mxu0
      %v558 = vadd.f32 0.0, %v557
      %v559 = vpop.f32.mrb[0].mxu0
      %560 = vmatprep.mubr.bf16.mxu0 0
      %561 = vmatmul.mubr.bf16.gmra.mrb[0].mxu0 %v421
      %v562 = vpop.f32.mrb[0].mxu0
      %v563 = vadd.f32 0.0, %v562
      %v564 = vpop.f32.mrb[0].mxu0
      %v565 = vpop.f32.mrb[0].mxu0
      %v566 = vadd.f32 0.0, %v565
      %v567 = vpop.f32.mrb[0].mxu0
      %568 = vmatprep.mubr.bf16.mxu0 0
      %569 = vmatmul.mubr.bf16.gmra.mrb[0].mxu0 %v422
      %v570 = vpop.f32.mrb[0].mxu0
      %v571 = vadd.f32 0.0, %v570
      %v572 = vpop.f32.mrb[0].mxu0
      %v573 = vpop.f32.mrb[0].mxu0
      %v574 = vadd.f32 0.0, %v573
      %v575 = vpop.f32.mrb[0].mxu0
      %576 = vmatprep.mubr.bf16.mxu0 0
      %577 = vmatmul.mubr.bf16.gmra.mrb[0].mxu0 %v423
      %v578 = vpop.f32.mrb[0].mxu0
      %v579 = vadd.f32 0.0, %v578
      %v580 = vpop.f32.mrb[0].mxu0
      %v581 = vpop.f32.mrb[0].mxu0
      %v582 = vadd.f32 0.0, %v581
      %v583 = vpop.f32.mrb[0].mxu0
      %584 = vdwg.mxu0
      %585 = vst [vmem:[%s172] sm:$0xff] %v523
      %586 = vst [vmem:[%s172 + $0x8] sm:$0xff] %v526
      %587 = vst [vmem:[%s172 + $0x10] sm:$0xff] %v531
      %588 = vst [vmem:[%s172 + $0x18] sm:$0xff] %v534
      %589 = vst [vmem:[%s172 + $0x20] sm:$0xff] %v539
      %590 = vst [vmem:[%s172 + $0x28] sm:$0xff] %v542
      %591 = vst [vmem:[%s172 + $0x30] sm:$0xff] %v547
      %592 = vst [vmem:[%s172 + $0x38] sm:$0xff] %v550
      %593 = vst [vmem:[%s172 + $0x40] sm:$0xff] %v555
      %594 = vst [vmem:[%s172 + $0x48] sm:$0xff] %v558
      %595 = vst [vmem:[%s172 + $0x50] sm:$0xff] %v563
      %596 = vst [vmem:[%s172 + $0x58] sm:$0xff] %v566
      %597 = vst [vmem:[%s172 + $0x60] sm:$0xff] %v571
      %598 = vst [vmem:[%s172 + $0x68] sm:$0xff] %v574
      %599 = vst [vmem:[%s172 + $0x70] sm:$0xff] %v579
      %600 = vst [vmem:[%s172 + $0x78] sm:$0xff] %v582
      %s601 = smul.u32 16, %s14
      %p602 = scmp.lt.s32.totalorder %s601, 31
      %s603 = scalar_select %p602, %s601, 31
      %s604 = smul.addr %s603, 8
      %s605 = scalar_lea.vmem %s3, %s604
      // Predicated region
      $region33: #{mlp_forward.1} parent=31 // pred_check
        %p606 = pneg %p100
      $region34: #{mlp_forward.1} parent=31 // pred_check_branch
        %608 = sbr.rel (%p606) target = $region36
      $region35: #{mlp_forward.1} parent=31 // pred_region
        %s609 = smul.u32 16, %s14
      $region36: #{mlp_forward.1} parent=31 // pred_fallthru
        _
    $region32: #{mlp_forward.1} parent=5 // pred_fallthru
      _
    %p610 = scmp.le.s32.totalorder 2, %s9
    // Predicated region
    $region37: #{mlp_forward.1} parent=5 // pred_check
      %p611 = pneg %p610
    $region38: #{mlp_forward.1} parent=5 // pred_check_branch
      %613 = sbr.rel (%p611) target = $region40
    $region39: #{mlp_forward.1} parent=5 // pred_region
      %s614 = ssub.s32 %s9, 2
      // Predicated region
      $region41: #{mlp_forward.1} parent=39 // pred_check
        %p615 = pneg %p106
      $region42: #{mlp_forward.1} parent=39 // pred_check_branch
        %617 = sbr.rel (%p615) target = $region44
      $region43: #{mlp_forward.1} parent=39 // pred_region
        %s618 = smul.u32 16, %s15
        %p619 = scmp.lt.s32.totalorder %s618, 31
        %s620 = scalar_select %p619, %s618, 31
        %s621 = smul.addr %s620, 8
        %s622 = scalar_lea.vmem %s3, %s621
      $region44: #{mlp_forward.1} parent=39 // pred_fallthru
        _
    $region40: #{mlp_forward.1} parent=5 // pred_fallthru
      _
  $region6: #{mlp_forward.1} parent=0 // loop_footer
    %s13 = sadd.s32 1, %s9
  $region7: #{mlp_forward.1} parent=0 // loop_footer_branch
    %8 = sbr.rel target = $region3
  $region8: #{mlp_forward.1} parent=0 // loop_exit
    _

</llo_original>
